<compile_context>
chip_gen: v5e
topology: v5e:2x2
jax: 0.10.0
libtpu: 0.0.40
codegen_flags: <defaults>
</compile_context>

<pallas_src>
import jax
import jax.numpy as jnp
from jax.experimental import pallas as pl
from jax.experimental.pallas import tpu as pltpu


def _round_up(x, m):
    return (x + m - 1) // m * m


def _mlp_kernel(dep_ref, head_ref, w1d_ref, w1h_ref, b1_ref, w2_ref, b2_ref, o_ref):
    # dep/head: (TM, h); w1d/w1h: (h, Hp); b1: (1, Hp) f32;
    # w2: (Hp, Kp); b2: (1, Kp) f32; o: (TM, Kp) f32.
    hid = jnp.dot(dep_ref[...], w1d_ref[...], preferred_element_type=jnp.float32)
    hid = hid + jnp.dot(head_ref[...], w1h_ref[...],
                        preferred_element_type=jnp.float32)
    hid = hid + b1_ref[...]
    hid = jnp.maximum(hid, 0.0)                 # ReLU (Dropout identity in eval)
    out = jnp.dot(hid.astype(w2_ref.dtype), w2_ref[...],
                  preferred_element_type=jnp.float32)
    out = out + b2_ref[...]
    o_ref[...] = out.astype(o_ref.dtype)


def label_predictor_forward(feat, heads, w1, b1, w2, b2,
                            *, compute_dtype=jnp.bfloat16, tile_m=512):
    """feat: (n, L, h) f32; heads: (n, l) int32, l = L-1.

    Weights are stored (in, out): w1: (2h, hidden), w2: (hidden, k).
    """
    n, L, h = feat.shape
    l = L - 1
    hid = w1.shape[1]
    k = w2.shape[1]
    M = n * l

    # ---- glue: build the two (M, h) row slabs (gather stays in XLA for now) ----
    dep = feat[:, 1:, :].reshape(M, h)
    head = jnp.take_along_axis(feat, heads[:, :, None], axis=1).reshape(M, h)

    # ---- pad hidden / label dims to lane-dense widths, split W1 ----
    Hp = _round_up(hid, 128)
    Kp = _round_up(k, 128)
    w1_p = jnp.pad(w1, ((0, 0), (0, Hp - hid)))
    w1_dep = w1_p[:h].astype(compute_dtype)              # (h, Hp)
    w1_head = w1_p[h:].astype(compute_dtype)             # (h, Hp)
    b1_p = jnp.pad(b1, (0, Hp - hid)).reshape(1, Hp).astype(jnp.float32)
    w2_p = jnp.pad(w2, ((0, Hp - hid), (0, Kp - k))).astype(compute_dtype)
    b2_p = jnp.pad(b2, (0, Kp - k)).reshape(1, Kp).astype(jnp.float32)

    # ---- pad / tile the row dimension (multiple of 16 covers bf16 packing) ----
    tm = min(tile_m, _round_up(M, 16))
    M_pad = _round_up(M, tm)
    dep = jnp.pad(dep, ((0, M_pad - M), (0, 0))).astype(compute_dtype)
    head = jnp.pad(head, ((0, M_pad - M), (0, 0))).astype(compute_dtype)
    grid = (M_pad // tm,)

    dsize = jnp.dtype(compute_dtype).itemsize
    cost = pl.CostEstimate(
        flops=2 * M_pad * (2 * h * Hp + Hp * Kp),
        transcendentals=0,
        bytes_accessed=(2 * M_pad * h * dsize          # dep + head tiles in
                        + M_pad * Kp * 4               # padded f32 output
                        + (2 * h * Hp + Hp * Kp) * dsize
                        + (Hp + Kp) * 4),              # resident weights/biases
    )

    out = pl.pallas_call(
        _mlp_kernel,
        out_shape=jax.ShapeDtypeStruct((M_pad, Kp), jnp.float32),
        grid=grid,
        in_specs=[
            pl.BlockSpec((tm, h), lambda i: (i, 0)),       # dependent rows
            pl.BlockSpec((tm, h), lambda i: (i, 0)),       # head rows
            pl.BlockSpec((h, Hp), lambda i: (0, 0)),       # W1 (dependent half)
            pl.BlockSpec((h, Hp), lambda i: (0, 0)),       # W1 (head half)
            pl.BlockSpec((1, Hp), lambda i: (0, 0)),       # b1
            pl.BlockSpec((Hp, Kp), lambda i: (0, 0)),      # W2
            pl.BlockSpec((1, Kp), lambda i: (0, 0)),       # b2
        ],
        out_specs=pl.BlockSpec((tm, Kp), lambda i: (i, 0)),
        compiler_params=pltpu.CompilerParams(
            dimension_semantics=("parallel",),
        ),
        cost_estimate=cost,
    )(dep, head, w1_dep, w1_head, b1_p, w2_p, b2_p)

    return out[:M, :k].reshape(n, l, k)


def _xavier_normal(key, fan_in, fan_out, dtype=jnp.float32):
    std = (2.0 / (fan_in + fan_out)) ** 0.5
    return std * jax.random.normal(key, (fan_in, fan_out), dtype=dtype)


if __name__ == "__main__":
    # Small shapes consistent with the module: batch n=2, seq L=9 (l=8),
    # feat_dim h=32, hidden_dim=32, n_labels k=8.
    n, L, h = 2, 9, 32
    hidden_dim, n_labels = 32, 8
    l = L - 1

    key = jax.random.PRNGKey(0)
    k_feat, k_heads, k_w1, k_b1, k_w2, k_b2 = jax.random.split(key, 6)

    feat = jax.random.normal(k_feat, (n, L, h), dtype=jnp.float32)
    heads = jax.random.randint(k_heads, (n, l), 0, L, dtype=jnp.int32)

    # Deterministic parameter init (xavier_normal_ on weights, small bias).
    w1 = _xavier_normal(k_w1, 2 * h, hidden_dim)      # Linear(2h -> hidden), (in, out)
    b1 = 0.01 * jax.random.normal(k_b1, (hidden_dim,), dtype=jnp.float32)
    w2 = _xavier_normal(k_w2, hidden_dim, n_labels)   # Linear(hidden -> k), (in, out)
    b2 = 0.01 * jax.random.normal(k_b2, (n_labels,), dtype=jnp.float32)

    # Pure-JAX f32 reference of the full forward.
    dep_r = feat[:, 1:, :]
    head_r = jnp.take_along_axis(feat, heads[:, :, None], axis=1)
    x_r = jnp.concatenate([dep_r, head_r], axis=2).reshape(n * l, 2 * h)
    ref = (jnp.maximum(x_r @ w1 + b1, 0.0) @ w2 + b2).reshape(n, l, n_labels)

    # f32 matmul operands (v5e-style path): tight check.
    out_f32 = label_predictor_forward(feat, heads, w1, b1, w2, b2,
                                      compute_dtype=jnp.float32)
    out_f32 = jax.block_until_ready(out_f32)
    assert out_f32.shape == (n, l, n_labels)
    assert jnp.allclose(out_f32, ref, atol=1e-5, rtol=1e-5)

    # bf16 matmul operands, f32 accumulation (v6e/v7x path): loose check.
    out_bf16 = label_predictor_forward(feat, heads, w1, b1, w2, b2,
                                       compute_dtype=jnp.bfloat16)
    out_bf16 = jax.block_until_ready(out_bf16)
    assert out_bf16.shape == (n, l, n_labels)
    assert jnp.allclose(out_bf16, ref, atol=1e-1, rtol=1e-1)

    print("KERNEL_OK")
</pallas_src>

<mosaic_0001>
module attributes {stable_mosaic.version = 11 : i64} {
  func.func @_mlp_kernel(%arg0: i32, %arg1: memref<16x32xf32, #tpu.memory_space<vmem>>, %arg2: memref<16x32xf32, #tpu.memory_space<vmem>>, %arg3: memref<32x128xf32, #tpu.memory_space<vmem>>, %arg4: memref<32x128xf32, #tpu.memory_space<vmem>>, %arg5: memref<1x128xf32, #tpu.memory_space<vmem>>, %arg6: memref<128x128xf32, #tpu.memory_space<vmem>>, %arg7: memref<1x128xf32, #tpu.memory_space<vmem>>, %arg8: memref<16x128xf32, #tpu.memory_space<vmem>>) attributes {dimension_semantics = [#tpu.dimension_semantics<parallel>], iteration_bounds = array<i64: 1>, scalar_prefetch = 0 : i64, scratch_operands = 0 : i64, tpu.core_type = #tpu.core_type<tc>, window_params = [{transform_indices = @transform_0, window_bounds = array<i64: 16, 32>}, {transform_indices = @transform_1, window_bounds = array<i64: 16, 32>}, {pipeline_mode = #tpu.pipeline_mode<synchronous>, transform_indices = @transform_2, window_bounds = array<i64: 32, 128>}, {pipeline_mode = #tpu.pipeline_mode<synchronous>, transform_indices = @transform_3, window_bounds = array<i64: 32, 128>}, {pipeline_mode = #tpu.pipeline_mode<synchronous>, transform_indices = @transform_4, window_bounds = array<i64: 1, 128>}, {pipeline_mode = #tpu.pipeline_mode<synchronous>, transform_indices = @transform_5, window_bounds = array<i64: 128, 128>}, {pipeline_mode = #tpu.pipeline_mode<synchronous>, transform_indices = @transform_6, window_bounds = array<i64: 1, 128>}, {transform_indices = @transform_7, window_bounds = array<i64: 16, 128>}]} {
    %c0 = arith.constant 0 : index
    %c0_0 = arith.constant 0 : index
    %0 = vector.load %arg1[%c0, %c0_0] : memref<16x32xf32, #tpu.memory_space<vmem>>, vector<16x32xf32>
    %c0_1 = arith.constant 0 : index
    %c0_2 = arith.constant 0 : index
    %1 = vector.load %arg3[%c0_1, %c0_2] : memref<32x128xf32, #tpu.memory_space<vmem>>, vector<32x128xf32>
    %cst = arith.constant dense<0.000000e+00> : vector<16x128xf32>
    %2 = tpu.matmul %0, %1, %cst {dimension_numbers = #tpu.dot_dimension_numbers<[1], [0], [0], [1], [0, 0, 1, 1], [], []>} : vector<16x32xf32>, vector<32x128xf32>, vector<16x128xf32> -> vector<16x128xf32>
    %c0_3 = arith.constant 0 : index
    %c0_4 = arith.constant 0 : index
    %3 = vector.load %arg2[%c0_3, %c0_4] : memref<16x32xf32, #tpu.memory_space<vmem>>, vector<16x32xf32>
    %c0_5 = arith.constant 0 : index
    %c0_6 = arith.constant 0 : index
    %4 = vector.load %arg4[%c0_5, %c0_6] : memref<32x128xf32, #tpu.memory_space<vmem>>, vector<32x128xf32>
    %cst_7 = arith.constant dense<0.000000e+00> : vector<16x128xf32>
    %5 = tpu.matmul %3, %4, %cst_7 {dimension_numbers = #tpu.dot_dimension_numbers<[1], [0], [0], [1], [0, 0, 1, 1], [], []>} : vector<16x32xf32>, vector<32x128xf32>, vector<16x128xf32> -> vector<16x128xf32>
    %6 = arith.addf %2, %5 : vector<16x128xf32>
    %c0_8 = arith.constant 0 : index
    %c0_9 = arith.constant 0 : index
    %7 = vector.load %arg5[%c0_8, %c0_9] : memref<1x128xf32, #tpu.memory_space<vmem>>, vector<1x128xf32>
    %8 = vector.broadcast %7 : vector<1x128xf32> to vector<16x128xf32>
    %9 = arith.addf %6, %8 : vector<16x128xf32>
    %cst_10 = arith.constant 0.000000e+00 : f32
    %10 = vector.broadcast %cst_10 : f32 to vector<16x128xf32>
    %11 = arith.maximumf %9, %10 : vector<16x128xf32>
    %c0_11 = arith.constant 0 : index
    %c0_12 = arith.constant 0 : index
    %12 = vector.load %arg6[%c0_11, %c0_12] : memref<128x128xf32, #tpu.memory_space<vmem>>, vector<128x128xf32>
    %cst_13 = arith.constant dense<0.000000e+00> : vector<16x128xf32>
    %13 = tpu.matmul %11, %12, %cst_13 {dimension_numbers = #tpu.dot_dimension_numbers<[1], [0], [0], [1], [0, 0, 1, 1], [], []>} : vector<16x128xf32>, vector<128x128xf32>, vector<16x128xf32> -> vector<16x128xf32>
    %c0_14 = arith.constant 0 : index
    %c0_15 = arith.constant 0 : index
    %14 = vector.load %arg7[%c0_14, %c0_15] : memref<1x128xf32, #tpu.memory_space<vmem>>, vector<1x128xf32>
    %15 = vector.broadcast %14 : vector<1x128xf32> to vector<16x128xf32>
    %16 = arith.addf %13, %15 : vector<16x128xf32>
    %c0_16 = arith.constant 0 : index
    %c0_17 = arith.constant 0 : index
    %17 = vector.load %arg8[%c0_16, %c0_17] : memref<16x128xf32, #tpu.memory_space<vmem>>, vector<16x128xf32>
    tpu.vector_store %arg8[%c0_16, %c0_17], %16 {strides = array<i32>} : memref<16x128xf32, #tpu.memory_space<vmem>>, vector<16x128xf32>,
    return
  }
  func.func @transform_0(%arg0: i32) -> (i32, i32) {
    %c0_i32 = arith.constant 0 : i32
    %c0_i32_0 = arith.constant 0 : i32
    return %arg0, %c0_i32 : i32, i32
  }
  func.func @transform_1(%arg0: i32) -> (i32, i32) {
    %c0_i32 = arith.constant 0 : i32
    %c0_i32_0 = arith.constant 0 : i32
    return %arg0, %c0_i32 : i32, i32
  }
  func.func @transform_2(%arg0: i32) -> (i32, i32) {
    %c0_i32 = arith.constant 0 : i32
    %c0_i32_0 = arith.constant 0 : i32
    %c0_i32_1 = arith.constant 0 : i32
    return %c0_i32, %c0_i32_0 : i32, i32
  }
  func.func @transform_3(%arg0: i32) -> (i32, i32) {
    %c0_i32 = arith.constant 0 : i32
    %c0_i32_0 = arith.constant 0 : i32
    %c0_i32_1 = arith.constant 0 : i32
    return %c0_i32, %c0_i32_0 : i32, i32
  }
  func.func @transform_4(%arg0: i32) -> (i32, i32) {
    %c0_i32 = arith.constant 0 : i32
    %c0_i32_0 = arith.constant 0 : i32
    %c0_i32_1 = arith.constant 0 : i32
    return %c0_i32, %c0_i32_0 : i32, i32
  }
  func.func @transform_5(%arg0: i32) -> (i32, i32) {
    %c0_i32 = arith.constant 0 : i32
    %c0_i32_0 = arith.constant 0 : i32
    %c0_i32_1 = arith.constant 0 : i32
    return %c0_i32, %c0_i32_0 : i32, i32
  }
  func.func @transform_6(%arg0: i32) -> (i32, i32) {
    %c0_i32 = arith.constant 0 : i32
    %c0_i32_0 = arith.constant 0 : i32
    %c0_i32_1 = arith.constant 0 : i32
    return %c0_i32, %c0_i32_0 : i32, i32
  }
  func.func @transform_7(%arg0: i32) -> (i32, i32) {
    %c0_i32 = arith.constant 0 : i32
    %c0_i32_0 = arith.constant 0 : i32
    return %arg0, %c0_i32 : i32, i32
  }
}

</mosaic_0001>

<llo_original>
// kernel: tpu_custom_call.1
$region0: #{tpu_custom_call.1}
  #allocation0 [shape = 'u32[]', space=smem, size = 0x4, offset = 0x4, fixed_abs, tag = 'smem constant byte address 0x4 - core index']
  #allocation1 [shape = 'u32[72,128]{1,0:T(1,128)}', space=vmem, size = 0x9000, scoped, tag = 'internal scratch']
  %s0 = inlined_call_operand.hbm [shape: f32[16,32], index: 0, kind: input, shape index: {}]
  %s1 = inlined_call_operand.hbm [shape: f32[16,32], index: 1, kind: input, shape index: {}]
  %s2 = inlined_call_operand.hbm [shape: f32[32,128], index: 2, kind: input, shape index: {}]
  %s3 = inlined_call_operand.hbm [shape: f32[32,128], index: 3, kind: input, shape index: {}]
  %s4 = inlined_call_operand.vmem [shape: f32[1,128], index: 4, kind: input, shape index: {}]
  %s5 = inlined_call_operand.hbm [shape: f32[128,128], index: 5, kind: input, shape index: {}]
  %s6 = inlined_call_operand.vmem [shape: f32[1,128], index: 6, kind: input, shape index: {}]
  %s7 = inlined_call_operand.hbm [shape: f32[16,128], index: 7, kind: output, shape index: {}]
  %s8 = sld [smem:[#allocation0]]
  $region58: #{tpu_custom_call.1} parent=0
    _
  %s10 = ssub.s32 1, %s8
  %s11 = scalar_select 0, %s10, %s8
  $region1: #{tpu_custom_call.1} parent=0
    #allocation2 [shape = 'u8[8192]{0}', space=vmem, size = 0x2000, scoped, tag = 'input window, operand 0, single buffered']
    #allocation3 [shape = 's32[1]{0}', space=sflag, size = 0x4, scoped, tag = 'scoped memory for tpu_custom_call.1']
    #allocation4 [shape = 's32[1]{0}', space=sflag, size = 0x4, scoped, tag = 'scoped memory for tpu_custom_call.1']
    #allocation5 [shape = 'u8[8192]{0}', space=vmem, size = 0x2000, scoped, tag = 'input window, operand 1, single buffered']
    #allocation6 [shape = 's32[1]{0}', space=sflag, size = 0x4, scoped, tag = 'scoped memory for tpu_custom_call.1']
    #allocation7 [shape = 'u8[16384]{0}', space=vmem, size = 0x4000, scoped, tag = 'input window, operand 2, single buffered']
    #allocation8 [shape = 'u8[16384]{0}', space=vmem, size = 0x4000, scoped, tag = 'input window, operand 3, single buffered']
    #allocation9 [shape = 's32[1]{0}', space=sflag, size = 0x4, scoped, tag = 'scoped memory for tpu_custom_call.1']
    #allocation10 [shape = 'u8[65536]{0}', space=vmem, size = 0x10000, scoped, tag = 'input window, operand 5, single buffered']
    #allocation11 [shape = 'u8[8192]{0}', space=vmem, size = 0x2000, scoped, tag = 'output window, operand 0, single buffered']
    %12 = vsyncpa [#allocation3], 0
    %13 = vsyncpa [#allocation6], 0
    %14 = vsyncpa [#allocation9], 0
    %15 = vsyncpa [#allocation4], 0
    // Predicated region
    $region2: #{tpu_custom_call.1} parent=1 // pred_check
      _
    $region3: #{tpu_custom_call.1} parent=1 // pred_check_branch
      %17 = sbr.rel (0) target = $region5
    $region4: #{tpu_custom_call.1} parent=1 // pred_region
      %19 = vsyncadd [#allocation3], 0
      %s20 = sshll.u32 %s0, 4
      %s21 = int_to_ptr.hbm [resolvable:$true] %s20
      %s22 = sshll.u32 [#allocation2], 4
      %s23 = int_to_ptr.vmem [resolvable:$true] %s22
      %28 = dma.hbm_to_vmem [thread:$0]  %s21, 256, %s23, [#allocation3], 128, 128, 8
    $region5: #{tpu_custom_call.1} parent=1 // pred_fallthru
      _
    // Predicated region
    $region6: #{tpu_custom_call.1} parent=1 // pred_check
      _
    $region7: #{tpu_custom_call.1} parent=1 // pred_check_branch
      %30 = sbr.rel (0) target = $region9
    $region8: #{tpu_custom_call.1} parent=1 // pred_region
      %32 = vsyncadd [#allocation6], 0
      %s33 = sshll.u32 %s1, 4
      %s34 = int_to_ptr.hbm [resolvable:$true] %s33
      %s35 = sshll.u32 [#allocation5], 4
      %s36 = int_to_ptr.vmem [resolvable:$true] %s35
      %41 = dma.hbm_to_vmem [thread:$0]  %s34, 256, %s36, [#allocation6], 128, 128, 8
    $region9: #{tpu_custom_call.1} parent=1 // pred_fallthru
      _
    // Predicated region
    $region10: #{tpu_custom_call.1} parent=1 // pred_check
      _
    $region11: #{tpu_custom_call.1} parent=1 // pred_check_branch
      %43 = sbr.rel (0) target = $region13
    $region12: #{tpu_custom_call.1} parent=1 // pred_region
      %45 = vsyncadd [#allocation6], 0
      %s46 = sshll.u32 %s2, 4
      %s47 = int_to_ptr.hbm [resolvable:$true] %s46
      %s48 = sshll.u32 [#allocation7], 4
      %s49 = int_to_ptr.vmem [resolvable:$true] %s48
      %54 = dma.hbm_to_vmem [thread:$0]  %s47, 512, %s49, [#allocation6], 128, 128, 8
    $region13: #{tpu_custom_call.1} parent=1 // pred_fallthru
      _
    // Predicated region
    $region14: #{tpu_custom_call.1} parent=1 // pred_check
      _
    $region15: #{tpu_custom_call.1} parent=1 // pred_check_branch
      %56 = sbr.rel (0) target = $region17
    $region16: #{tpu_custom_call.1} parent=1 // pred_region
      %58 = vsyncadd [#allocation9], 0
      %s59 = sshll.u32 %s3, 4
      %s60 = int_to_ptr.hbm [resolvable:$true] %s59
      %s61 = sshll.u32 [#allocation8], 4
      %s62 = int_to_ptr.vmem [resolvable:$true] %s61
      %67 = dma.hbm_to_vmem [thread:$0]  %s60, 512, %s62, [#allocation9], 128, 128, 8
    $region17: #{tpu_custom_call.1} parent=1 // pred_fallthru
      _
    // Predicated region
    $region18: #{tpu_custom_call.1} parent=1 // pred_check
      _
    $region19: #{tpu_custom_call.1} parent=1 // pred_check_branch
      %69 = sbr.rel (0) target = $region21
    $region20: #{tpu_custom_call.1} parent=1 // pred_region
      _
    $region21: #{tpu_custom_call.1} parent=1 // pred_fallthru
      _
    // Predicated region
    $region22: #{tpu_custom_call.1} parent=1 // pred_check
      _
    $region23: #{tpu_custom_call.1} parent=1 // pred_check_branch
      %71 = sbr.rel (0) target = $region25
    $region24: #{tpu_custom_call.1} parent=1 // pred_region
      %73 = vsyncadd [#allocation9], 0
      %s74 = sshll.u32 %s5, 4
      %s75 = int_to_ptr.hbm [resolvable:$true] %s74
      %s76 = sshll.u32 [#allocation10], 4
      %s77 = int_to_ptr.vmem [resolvable:$true] %s76
      %82 = dma.hbm_to_vmem [thread:$0]  %s75, 2048, %s77, [#allocation9], 128, 128, 8
    $region25: #{tpu_custom_call.1} parent=1 // pred_fallthru
      _
    // Predicated region
    $region26: #{tpu_custom_call.1} parent=1 // pred_check
      _
    $region27: #{tpu_custom_call.1} parent=1 // pred_check_branch
      %84 = sbr.rel (0) target = $region29
    $region28: #{tpu_custom_call.1} parent=1 // pred_region
      _
    $region29: #{tpu_custom_call.1} parent=1 // pred_fallthru
      _
    // Predicated region
    $region30: #{tpu_custom_call.1} parent=1 // pred_check
      _
    $region31: #{tpu_custom_call.1} parent=1 // pred_check_branch
      %86 = sbr.rel (0) target = $region33
    $region32: #{tpu_custom_call.1} parent=1 // pred_region
      %88 = dma.done [#allocation3], 256
    $region33: #{tpu_custom_call.1} parent=1 // pred_fallthru
      _
    // Predicated region
    $region34: #{tpu_custom_call.1} parent=1 // pred_check
      _
    $region35: #{tpu_custom_call.1} parent=1 // pred_check_branch
      %90 = sbr.rel (0) target = $region37
    $region36: #{tpu_custom_call.1} parent=1 // pred_region
      %92 = dma.done [#allocation6], 256
    $region37: #{tpu_custom_call.1} parent=1 // pred_fallthru
      _
    // Predicated region
    $region38: #{tpu_custom_call.1} parent=1 // pred_check
      _
    $region39: #{tpu_custom_call.1} parent=1 // pred_check_branch
      %94 = sbr.rel (0) target = $region41
    $region40: #{tpu_custom_call.1} parent=1 // pred_region
      %96 = dma.done [#allocation6], 512
    $region41: #{tpu_custom_call.1} parent=1 // pred_fallthru
      _
    // Predicated region
    $region42: #{tpu_custom_call.1} parent=1 // pred_check
      _
    $region43: #{tpu_custom_call.1} parent=1 // pred_check_branch
      %98 = sbr.rel (0) target = $region45
    $region44: #{tpu_custom_call.1} parent=1 // pred_region
      %100 = dma.done [#allocation9], 512
    $region45: #{tpu_custom_call.1} parent=1 // pred_fallthru
      _
    // Predicated region
    $region46: #{tpu_custom_call.1} parent=1 // pred_check
      _
    $region47: #{tpu_custom_call.1} parent=1 // pred_check_branch
      %102 = sbr.rel (0) target = $region49
    $region48: #{tpu_custom_call.1} parent=1 // pred_region
      %104 = dma.done [#allocation9], 2048
    $region49: #{tpu_custom_call.1} parent=1 // pred_fallthru
      _
    %v105 = vld [vmem:[#allocation2] sm:$0xff]
    %v106 = vld [vmem:[#allocation2 + $0x8] sm:$0xff]
    %v107 = vld [vmem:[#allocation7] sm:$0xff]
    %v108 = vld [vmem:[#allocation7 + $0x8] sm:$0xff]
    %v109 = vld [vmem:[#allocation7 + $0x10] sm:$0xff]
    %v110 = vld [vmem:[#allocation7 + $0x18] sm:$0xff]
    %v111 = vld [vmem:[#allocation5] sm:$0xff]
    %v112 = vld [vmem:[#allocation5 + $0x8] sm:$0xff]
    %v113 = vld [vmem:[#allocation8] sm:$0xff]
    %v114 = vld [vmem:[#allocation8 + $0x8] sm:$0xff]
    %v115 = vld [vmem:[#allocation8 + $0x10] sm:$0xff]
    %v116 = vld [vmem:[#allocation8 + $0x18] sm:$0xff]
    %vm117 = vcmask 261120
    %v119 = vsel %vm117, %v111, 0
    %v122 = vsel %vm117, %v112, 0
    %124 = vmatpush.msra.mxu0 0.0
    %125 = vmatpush.msra.mxu0 0.0
    %126 = vmatpush.msra.mxu0 0.0
    %127 = vmatpush.msra.mxu0 0.0
    %128 = vmatpush.msra.mxu0 0.0
    %129 = vmatpush.msra.mxu0 0.0
    %130 = vmatpush.msra.mxu0 0.0
    %131 = vmatpush.msra.mxu0 0.0
    %132 = vmatpush.msra.mxu0 0.0
    %133 = vmatpush.msra.mxu0 0.0
    %134 = vmatpush.msra.mxu0 0.0
    %135 = vmatpush.msra.mxu0 0.0
    %136 = vmatpush.msra.mxu0 %v116
    %137 = vmatpush.msra.mxu0 %v115
    %138 = vmatpush.msra.mxu0 %v114
    %139 = vmatpush.msra.mxu0 %v113
    %140 = vmatmul.f32.gmra.mxu0 %v119
    %v141 = vpop.f32.mrf.mxu0
    %v142 = vadd.f32 0.0, %v141
    %143 = vmatmul.f32.gmra.mxu0 %v122
    %v144 = vpop.f32.mrf.mxu0
    %v145 = vadd.f32 0.0, %v144
    %146 = vdwg.mxu0
    %v148 = vsel %vm117, %v105, 0
    %v151 = vsel %vm117, %v106, 0
    %153 = vmatpush.msra.mxu0 0.0
    %154 = vmatpush.msra.mxu0 0.0
    %155 = vmatpush.msra.mxu0 0.0
    %156 = vmatpush.msra.mxu0 0.0
    %157 = vmatpush.msra.mxu0 0.0
    %158 = vmatpush.msra.mxu0 0.0
    %159 = vmatpush.msra.mxu0 0.0
    %160 = vmatpush.msra.mxu0 0.0
    %161 = vmatpush.msra.mxu0 0.0
    %162 = vmatpush.msra.mxu0 0.0
    %163 = vmatpush.msra.mxu0 0.0
    %164 = vmatpush.msra.mxu0 0.0
    %165 = vmatpush.msra.mxu0 %v110
    %166 = vmatpush.msra.mxu0 %v109
    %167 = vmatpush.msra.mxu0 %v108
    %168 = vmatpush.msra.mxu0 %v107
    %169 = vmatmul.f32.gmra.mxu0 %v148
    %v170 = vpop.f32.mrf.mxu0
    %v171 = vadd.f32 %v142, %v170
    %172 = vmatmul.f32.gmra.mxu0 %v151
    %v173 = vpop.f32.mrf.mxu0
    %v174 = vadd.f32 %v145, %v173
    %175 = vdwg.mxu0
    %v176 = vld [vmem:[%s4] sm:$0x1]
    %v178 = vperm.slane %v176, 0
    %v180 = vadd.f32 %v171, %v178
    %v181 = vadd.f32 %v174, %v178
    %v182 = vmax.f32 %v180, 0.0
    %v183 = vmax.f32 %v181, 0.0
    %v184 = vld [vmem:[#allocation10] sm:$0xff]
    %v185 = vld [vmem:[#allocation10 + $0x8] sm:$0xff]
    %v186 = vld [vmem:[#allocation10 + $0x10] sm:$0xff]
    %v187 = vld [vmem:[#allocation10 + $0x18] sm:$0xff]
    %v188 = vld [vmem:[#allocation10 + $0x20] sm:$0xff]
    %v189 = vld [vmem:[#allocation10 + $0x28] sm:$0xff]
    %v190 = vld [vmem:[#allocation10 + $0x30] sm:$0xff]
    %v191 = vld [vmem:[#allocation10 + $0x38] sm:$0xff]
    %v192 = vld [vmem:[#allocation10 + $0x40] sm:$0xff]
    %v193 = vld [vmem:[#allocation10 + $0x48] sm:$0xff]
    %v194 = vld [vmem:[#allocation10 + $0x50] sm:$0xff]
    %v195 = vld [vmem:[#allocation10 + $0x58] sm:$0xff]
    %v196 = vld [vmem:[#allocation10 + $0x60] sm:$0xff]
    %v197 = vld [vmem:[#allocation10 + $0x68] sm:$0xff]
    %v198 = vld [vmem:[#allocation10 + $0x70] sm:$0xff]
    %v199 = vld [vmem:[#allocation10 + $0x78] sm:$0xff]
    %v200 = vld [vmem:[%s6] sm:$0x1]
    %v202 = vperm.slane %v200, 0
    %204 = vmatpush.msra.mxu0 %v199
    %205 = vmatpush.msra.mxu0 %v198
    %206 = vmatpush.msra.mxu0 %v197
    %207 = vmatpush.msra.mxu0 %v196
    %208 = vmatpush.msra.mxu0 %v195
    %209 = vmatpush.msra.mxu0 %v194
    %210 = vmatpush.msra.mxu0 %v193
    %211 = vmatpush.msra.mxu0 %v192
    %212 = vmatpush.msra.mxu0 %v191
    %213 = vmatpush.msra.mxu0 %v190
    %214 = vmatpush.msra.mxu0 %v189
    %215 = vmatpush.msra.mxu0 %v188
    %216 = vmatpush.msra.mxu0 %v187
    %217 = vmatpush.msra.mxu0 %v186
    %218 = vmatpush.msra.mxu0 %v185
    %219 = vmatpush.msra.mxu0 %v184
    %220 = vmatmul.f32.gmra.mxu0 %v182
    %v221 = vpop.f32.mrf.mxu0
    %v222 = vadd.f32 %v202, %v221
    %223 = vmatmul.f32.gmra.mxu0 %v183
    %v224 = vpop.f32.mrf.mxu0
    %v225 = vadd.f32 %v202, %v224
    %226 = vdwg.mxu0
    %227 = vst [vmem:[#allocation11] sm:$0xff] %v222
    %228 = vst [vmem:[#allocation11 + $0x8] sm:$0xff] %v225
    // Predicated region
    $region50: #{tpu_custom_call.1} parent=1 // pred_check
      _
    $region51: #{tpu_custom_call.1} parent=1 // pred_check_branch
      %230 = sbr.rel (0) target = $region53
    $region52: #{tpu_custom_call.1} parent=1 // pred_region
      %232 = vsyncadd [#allocation4], 0
      %s233 = sshll.u32 [#allocation11], 4
      %s234 = int_to_ptr.vmem [resolvable:$true] %s233
      %s235 = sshll.u32 %s7, 4
      %s236 = int_to_ptr.hbm [resolvable:$true] %s235
      %241 = dma.vmem_to_hbm [thread:$0]  %s234, 256, %s236, [#allocation4], 128, 128, 8
    $region53: #{tpu_custom_call.1} parent=1 // pred_fallthru
      _
    // Predicated region
    $region54: #{tpu_custom_call.1} parent=1 // pred_check
      _
    $region55: #{tpu_custom_call.1} parent=1 // pred_check_branch
      %243 = sbr.rel (0) target = $region57
    $region56: #{tpu_custom_call.1} parent=1 // pred_region
      %245 = dma.done [#allocation4], 256
    $region57: #{tpu_custom_call.1} parent=1 // pred_fallthru
      _
    %246 = vsyncpa [#allocation3], 1
    %247 = vsyncpa [#allocation6], 1
    %248 = vsyncpa [#allocation9], 1
    %249 = vsyncpa [#allocation4], 1

</llo_original>
